<compile_context>
chip_gen: v6e
topology: v6e:2x2x1
jax: 0.10.0
libtpu: 0.0.40
codegen_flags: <defaults>
</compile_context>

<pallas_src>
import jax
import jax.numpy as jnp
from jax import lax
from jax.experimental import pallas as pl
from jax.experimental.pallas import tpu as pltpu

_BN_EPS = 1e-5
_INV_SQRT2 = 0.7071067811865476
_N_OUT = 9          # logical output width of high_model
_N_PAD = 128        # lane-dense padded output width (unmasked vst)


def _base_multi_kernel(x_ref, pool_w_ref, w1_ref, b1_ref, w2_ref, b2_ref, out_ref):
    f32 = jnp.float32
    x = x_ref[...]                                    # [bB, S, F], native dtype (f32/bf16)
    pw = pool_w_ref[...].astype(f32)                  # [1, F]

    # ---- attention pooling (pools[2]) ----
    # score projection: VPU multiply + lane reduce over F (f32 promotion fused in).
    scores = jnp.sum(x * pw, axis=-1)                 # [bB, S] f32
    scores = scores - jnp.max(scores, axis=1, keepdims=True)   # stable softmax over seq
    e = jnp.exp(scores)
    attn = e / jnp.sum(e, axis=1, keepdims=True)      # exact normalization (PyTorch parity)

    # weighted pooling: VPU multiply + sublane reduce over S (avoids bB degenerate
    # M=1 MXU matmuls, the worst-case MXU shape on every generation).
    feat = jnp.sum(attn[:, :, None] * x, axis=1)      # [bB, F] f32

    # ---- high_model with eval-mode BatchNorms folded into the linears (host-side) ----
    h = jnp.dot(feat, w1_ref[...], preferred_element_type=f32) + b1_ref[...]
    h = 0.5 * h * (1.0 + lax.erf(h * _INV_SQRT2))     # exact GELU (nn.GELU default)
    o = jnp.dot(h, w2_ref[...], preferred_element_type=f32) + b2_ref[...]
    out_ref[...] = jax.nn.sigmoid(o).astype(out_ref.dtype)     # lane-dense [bB, 128] store


def _param_block_spec(shape):
    """Replicated (grid-invariant) parameter block; single-buffered to save VMEM."""
    nd = len(shape)
    idx = lambda i, _nd=nd: (0,) * _nd
    try:
        return pl.BlockSpec(shape, idx, pipeline_mode=pl.Buffered(1))
    except TypeError:   # older jax without pipeline_mode: fall back to default buffering
        return pl.BlockSpec(shape, idx)


def _vmem_limit_bytes():
    try:
        cap = int(pltpu.get_tpu_info().vmem_capacity_bytes)
    except Exception:
        cap = 64 << 20          # v7x floor -> safe on every generation
    return min(int(0.85 * cap), 112 << 20)


def base_multi_forward(inputs, params, *, block_b=None):
    """inputs: [B, S, F] (f32 or bf16).  Returns {'high': [B, 9]} in float32."""
    B, S, F = inputs.shape
    E = params["w1"].shape[1]
    f32 = jnp.float32

    # ---- host-side prep: fold eval-mode BatchNorms into the linears (exact) ----
    s1 = (params["bn1_gamma"] / jnp.sqrt(params["bn1_var"] + _BN_EPS)).astype(f32)   # [1, E]
    w1 = params["w1"].astype(f32) * s1                                               # [F, E]
    b1 = (params["b1"].astype(f32) - params["bn1_mean"]) * s1 + params["bn1_beta"]   # [1, E]

    s2 = (params["bn2_gamma"] / jnp.sqrt(params["bn2_var"] + _BN_EPS)).astype(f32)   # [1, 9]
    w2 = params["w2"].astype(f32) * s2                                               # [E, 9]
    b2 = (params["b2"].astype(f32) - params["bn2_mean"]) * s2 + params["bn2_beta"]   # [1, 9]

    # pad the output head to a lane-dense width (unmasked vst; extra cols sliced below)
    w2p = jnp.zeros((E, _N_PAD), f32).at[:, :_N_OUT].set(w2)
    b2p = jnp.zeros((1, _N_PAD), f32).at[:, :_N_OUT].set(b2)
    pool_w = params["pool_w"].astype(f32)                                            # [1, F]

    # ---- VMEM-budget-driven batch tile ----
    vmem_limit = _vmem_limit_bytes()
    itemsize = jnp.dtype(inputs.dtype).itemsize
    param_bytes = sum(int(a.size) * jnp.dtype(a.dtype).itemsize
                      for a in (pool_w, w1, b1, w2p, b2p))
    # per batch-row cost: double-buffered x tile + f32 in-kernel intermediates + out tile
    per_row = 2 * S * F * itemsize + 2 * S * F * 4 + 2 * _N_PAD * 4
    if block_b is None:
        budget = int(0.8 * (vmem_limit - param_bytes))
        bB = max(8, min(512, (max(budget, 0) // per_row // 8) * 8))
    else:
        bB = max(8, (block_b // 8) * 8)
    if bB >= B:
        bB = B                          # single block: no ragged edge, no padding at all
    grid = (pl.cdiv(B, bB),)            # ragged last block handled by Pallas (no host pad)

    in_specs = [
        pl.BlockSpec((bB, S, F), lambda i: (i, 0, 0)),   # x: pipelined per batch tile
        _param_block_spec(pool_w.shape),                 # params: replicated, 1-buffered
        _param_block_spec(w1.shape), _param_block_spec(b1.shape),
        _param_block_spec(w2p.shape), _param_block_spec(b2p.shape),
    ]
    out_spec = pl.BlockSpec((bB, _N_PAD), lambda i: (i, 0))

    out_pad = pl.pallas_call(
        _base_multi_kernel,
        out_shape=jax.ShapeDtypeStruct((B, _N_PAD), f32),
        grid=grid,
        in_specs=in_specs,
        out_specs=out_spec,
        compiler_params=pltpu.CompilerParams(
            dimension_semantics=("parallel",),   # batch axis; sharded across TCs where >1
            vmem_limit_bytes=int(vmem_limit)),
    )(inputs, pool_w, w1, b1, w2p, b2p)

    return {"high": out_pad[:, :_N_OUT]}


def _reference_forward(inputs, params):
    """Pure-JAX eval-mode reference (unfolded BN), for correctness checking."""
    f32 = jnp.float32
    x = inputs.astype(f32)
    scores = jnp.einsum("bsf,of->bso", x, params["pool_w"].astype(f32))     # [B, S, 1]
    attn = jax.nn.softmax(scores, axis=1)
    feat = jnp.sum(attn * x, axis=1)                                        # [B, F]
    h = feat @ params["w1"] + params["b1"]
    h = ((h - params["bn1_mean"]) / jnp.sqrt(params["bn1_var"] + _BN_EPS)
         * params["bn1_gamma"] + params["bn1_beta"])
    h = 0.5 * h * (1.0 + lax.erf(h * _INV_SQRT2))
    o = h @ params["w2"] + params["b2"]
    o = ((o - params["bn2_mean"]) / jnp.sqrt(params["bn2_var"] + _BN_EPS)
         * params["bn2_gamma"] + params["bn2_beta"])
    return jax.nn.sigmoid(o)


def init_params(key, feat_dim, embedding_size):
    ks = jax.random.split(key, 10)
    f32 = jnp.float32
    # pools[2]: Linear(feat_dim, 1, bias=False) -> weight [1, feat_dim]
    pool_w = jax.random.normal(ks[0], (1, feat_dim), f32) * (1.0 / jnp.sqrt(feat_dim))
    # Linear(feat_dim, embedding_size), stored as [in, out]
    w1 = jax.random.normal(ks[1], (feat_dim, embedding_size), f32) * (1.0 / jnp.sqrt(feat_dim))
    b1 = jax.random.normal(ks[2], (1, embedding_size), f32) * 0.01
    # Linear(embedding_size, 9), stored as [in, out]
    w2 = jax.random.normal(ks[3], (embedding_size, _N_OUT), f32) * (1.0 / jnp.sqrt(embedding_size))
    b2 = jax.random.normal(ks[4], (1, _N_OUT), f32) * 0.01
    # BatchNorm1d(embedding_size): eval-mode running stats
    bn1_gamma = jnp.ones((1, embedding_size), f32)
    bn1_beta = jnp.zeros((1, embedding_size), f32)
    bn1_mean = jax.random.normal(ks[5], (1, embedding_size), f32) * 0.1
    bn1_var = 1.0 + 0.1 * jax.random.uniform(ks[6], (1, embedding_size), f32)
    # BatchNorm1d(9)
    bn2_gamma = jnp.ones((1, _N_OUT), f32)
    bn2_beta = jnp.zeros((1, _N_OUT), f32)
    bn2_mean = jax.random.normal(ks[7], (1, _N_OUT), f32) * 0.1
    bn2_var = 1.0 + 0.1 * jax.random.uniform(ks[8], (1, _N_OUT), f32)
    return dict(pool_w=pool_w,
                w1=w1, b1=b1, bn1_gamma=bn1_gamma, bn1_beta=bn1_beta,
                bn1_mean=bn1_mean, bn1_var=bn1_var,
                w2=w2, b2=b2, bn2_gamma=bn2_gamma, bn2_beta=bn2_beta,
                bn2_mean=bn2_mean, bn2_var=bn2_var)


if __name__ == "__main__":
    B, S, F, E = 4, 8, 32, 16          # batch, seqlen, feat_dim, embedding_size
    key = jax.random.PRNGKey(0)
    k_x, k_p = jax.random.split(key)
    x = jax.random.normal(k_x, (B, S, F), jnp.float32)
    params = init_params(k_p, F, E)

    out = base_multi_forward(x, params)
    jax.block_until_ready(out["high"])
    assert out["high"].shape == (B, _N_OUT)
    assert out["high"].dtype == jnp.float32
    ref = _reference_forward(x, params)
    assert float(jnp.max(jnp.abs(out["high"] - ref))) < 3e-2

    # ragged batch (B not a multiple of the tile): exercises the no-host-pad edge block
    B2 = 10
    x2 = jax.random.normal(jax.random.PRNGKey(1), (B2, S, F), jnp.float32)
    out2 = base_multi_forward(x2, params, block_b=8)
    jax.block_until_ready(out2["high"])
    assert out2["high"].shape == (B2, _N_OUT)
    ref2 = _reference_forward(x2, params)
    assert float(jnp.max(jnp.abs(out2["high"] - ref2))) < 3e-2

    print("KERNEL_OK")
</pallas_src>

<mosaic_0001>
module attributes {stable_mosaic.version = 11 : i64} {
  func.func @_base_multi_kernel(%arg0: i32, %arg1: memref<4x8x32xf32, #tpu.memory_space<vmem>>, %arg2: memref<1x32xf32, #tpu.memory_space<vmem>>, %arg3: memref<32x16xf32, #tpu.memory_space<vmem>>, %arg4: memref<1x16xf32, #tpu.memory_space<vmem>>, %arg5: memref<16x128xf32, #tpu.memory_space<vmem>>, %arg6: memref<1x128xf32, #tpu.memory_space<vmem>>, %arg7: memref<4x128xf32, #tpu.memory_space<vmem>>) attributes {dimension_semantics = [#tpu.dimension_semantics<parallel>], iteration_bounds = array<i64: 1>, scalar_prefetch = 0 : i64, scratch_operands = 0 : i64, tpu.core_type = #tpu.core_type<tc>, window_params = [{transform_indices = @transform_0, window_bounds = array<i64: 4, 8, 32>}, {pipeline_mode = #tpu.pipeline_mode<synchronous>, transform_indices = @transform_1, window_bounds = array<i64: 1, 32>}, {pipeline_mode = #tpu.pipeline_mode<synchronous>, transform_indices = @transform_2, window_bounds = array<i64: 32, 16>}, {pipeline_mode = #tpu.pipeline_mode<synchronous>, transform_indices = @transform_3, window_bounds = array<i64: 1, 16>}, {pipeline_mode = #tpu.pipeline_mode<synchronous>, transform_indices = @transform_4, window_bounds = array<i64: 16, 128>}, {pipeline_mode = #tpu.pipeline_mode<synchronous>, transform_indices = @transform_5, window_bounds = array<i64: 1, 128>}, {transform_indices = @transform_6, window_bounds = array<i64: 4, 128>}]} {
    %c0 = arith.constant 0 : index
    %c0_0 = arith.constant 0 : index
    %c0_1 = arith.constant 0 : index
    %0 = vector.load %arg1[%c0, %c0_0, %c0_1] : memref<4x8x32xf32, #tpu.memory_space<vmem>>, vector<4x8x32xf32>
    %c0_2 = arith.constant 0 : index
    %c0_3 = arith.constant 0 : index
    %1 = vector.load %arg2[%c0_2, %c0_3] : memref<1x32xf32, #tpu.memory_space<vmem>>, vector<1x32xf32>
    %2 = vector.shape_cast %1 : vector<1x32xf32> to vector<1x1x32xf32>
    %3 = vector.broadcast %2 : vector<1x1x32xf32> to vector<4x8x32xf32>
    %4 = arith.mulf %0, %3 : vector<4x8x32xf32>
    %cst = arith.constant dense<0.000000e+00> : vector<4x8xf32>
    %5 = vector.multi_reduction <add>, %4, %cst [2] : vector<4x8x32xf32> to vector<4x8xf32>
    %cst_4 = arith.constant dense<0xFF800000> : vector<4xf32>
    %6 = vector.multi_reduction <maximumf>, %5, %cst_4 [1] : vector<4x8xf32> to vector<4xf32>
    %7 = vector.shape_cast %6 : vector<4xf32> to vector<4x1xf32>
    %8 = vector.broadcast %7 : vector<4x1xf32> to vector<4x8xf32>
    %9 = arith.subf %5, %8 : vector<4x8xf32>
    %10 = math.exp %9 : vector<4x8xf32>
    %cst_5 = arith.constant dense<0.000000e+00> : vector<4xf32>
    %11 = vector.multi_reduction <add>, %10, %cst_5 [1] : vector<4x8xf32> to vector<4xf32>
    %12 = vector.shape_cast %11 : vector<4xf32> to vector<4x1xf32>
    %13 = vector.broadcast %12 : vector<4x1xf32> to vector<4x8xf32>
    %14 = arith.divf %10, %13 : vector<4x8xf32>
    %15 = vector.shape_cast %14 : vector<4x8xf32> to vector<4x8x1xf32>
    %16 = vector.broadcast %15 : vector<4x8x1xf32> to vector<4x8x32xf32>
    %17 = arith.mulf %16, %0 : vector<4x8x32xf32>
    %cst_6 = arith.constant dense<0.000000e+00> : vector<4x32xf32>
    %18 = vector.multi_reduction <add>, %17, %cst_6 [1] : vector<4x8x32xf32> to vector<4x32xf32>
    %c0_7 = arith.constant 0 : index
    %c0_8 = arith.constant 0 : index
    %19 = vector.load %arg3[%c0_7, %c0_8] : memref<32x16xf32, #tpu.memory_space<vmem>>, vector<32x16xf32>
    %cst_9 = arith.constant dense<0.000000e+00> : vector<4x16xf32>
    %20 = tpu.matmul %18, %19, %cst_9 {dimension_numbers = #tpu.dot_dimension_numbers<[1], [0], [0], [1], [0, 0, 1, 1], [], []>} : vector<4x32xf32>, vector<32x16xf32>, vector<4x16xf32> -> vector<4x16xf32>
    %c0_10 = arith.constant 0 : index
    %c0_11 = arith.constant 0 : index
    %21 = vector.load %arg4[%c0_10, %c0_11] : memref<1x16xf32, #tpu.memory_space<vmem>>, vector<1x16xf32>
    %22 = vector.broadcast %21 : vector<1x16xf32> to vector<4x16xf32>
    %23 = arith.addf %20, %22 : vector<4x16xf32>
    %cst_12 = arith.constant 5.000000e-01 : f32
    %24 = vector.broadcast %cst_12 : f32 to vector<4x16xf32>
    %25 = arith.mulf %24, %23 : vector<4x16xf32>
    %cst_13 = arith.constant 0.707106769 : f32
    %26 = vector.broadcast %cst_13 : f32 to vector<4x16xf32>
    %27 = arith.mulf %23, %26 : vector<4x16xf32>
    %28 = math.erf %27 : vector<4x16xf32>
    %cst_14 = arith.constant 1.000000e+00 : f32
    %29 = vector.broadcast %cst_14 : f32 to vector<4x16xf32>
    %30 = arith.addf %29, %28 : vector<4x16xf32>
    %31 = arith.mulf %25, %30 : vector<4x16xf32>
    %c0_15 = arith.constant 0 : index
    %c0_16 = arith.constant 0 : index
    %32 = vector.load %arg5[%c0_15, %c0_16] : memref<16x128xf32, #tpu.memory_space<vmem>>, vector<16x128xf32>
    %cst_17 = arith.constant dense<0.000000e+00> : vector<4x128xf32>
    %33 = tpu.matmul %31, %32, %cst_17 {dimension_numbers = #tpu.dot_dimension_numbers<[1], [0], [0], [1], [0, 0, 1, 1], [], []>} : vector<4x16xf32>, vector<16x128xf32>, vector<4x128xf32> -> vector<4x128xf32>
    %c0_18 = arith.constant 0 : index
    %c0_19 = arith.constant 0 : index
    %34 = vector.load %arg6[%c0_18, %c0_19] : memref<1x128xf32, #tpu.memory_space<vmem>>, vector<1x128xf32>
    %35 = vector.broadcast %34 : vector<1x128xf32> to vector<4x128xf32>
    %36 = arith.addf %33, %35 : vector<4x128xf32>
    %37 = arith.negf %36 : vector<4x128xf32>
    %38 = math.exp %37 : vector<4x128xf32>
    %cst_20 = arith.constant 1.000000e+00 : f32
    %39 = vector.broadcast %cst_20 : f32 to vector<4x128xf32>
    %40 = arith.addf %39, %38 : vector<4x128xf32>
    %41 = arith.divf %39, %40 : vector<4x128xf32>
    %c0_21 = arith.constant 0 : index
    %c0_22 = arith.constant 0 : index
    %42 = vector.load %arg7[%c0_21, %c0_22] : memref<4x128xf32, #tpu.memory_space<vmem>>, vector<4x128xf32>
    tpu.vector_store %arg7[%c0_21, %c0_22], %41 {strides = array<i32>} : memref<4x128xf32, #tpu.memory_space<vmem>>, vector<4x128xf32>,
    return
  }
  func.func @transform_0(%arg0: i32) -> (i32, i32, i32) {
    %c0_i32 = arith.constant 0 : i32
    %c0_i32_0 = arith.constant 0 : i32
    %c0_i32_1 = arith.constant 0 : i32
    return %arg0, %c0_i32, %c0_i32_0 : i32, i32, i32
  }
  func.func @transform_1(%arg0: i32) -> (i32, i32) {
    %c0_i32 = arith.constant 0 : i32
    %c0_i32_0 = arith.constant 0 : i32
    %c0_i32_1 = arith.constant 0 : i32
    return %c0_i32, %c0_i32_0 : i32, i32
  }
  func.func @transform_2(%arg0: i32) -> (i32, i32) {
    %c0_i32 = arith.constant 0 : i32
    %c0_i32_0 = arith.constant 0 : i32
    %c0_i32_1 = arith.constant 0 : i32
    return %c0_i32, %c0_i32_0 : i32, i32
  }
  func.func @transform_3(%arg0: i32) -> (i32, i32) {
    %c0_i32 = arith.constant 0 : i32
    %c0_i32_0 = arith.constant 0 : i32
    %c0_i32_1 = arith.constant 0 : i32
    return %c0_i32, %c0_i32_0 : i32, i32
  }
  func.func @transform_4(%arg0: i32) -> (i32, i32) {
    %c0_i32 = arith.constant 0 : i32
    %c0_i32_0 = arith.constant 0 : i32
    %c0_i32_1 = arith.constant 0 : i32
    return %c0_i32, %c0_i32_0 : i32, i32
  }
  func.func @transform_5(%arg0: i32) -> (i32, i32) {
    %c0_i32 = arith.constant 0 : i32
    %c0_i32_0 = arith.constant 0 : i32
    %c0_i32_1 = arith.constant 0 : i32
    return %c0_i32, %c0_i32_0 : i32, i32
  }
  func.func @transform_6(%arg0: i32) -> (i32, i32) {
    %c0_i32 = arith.constant 0 : i32
    %c0_i32_0 = arith.constant 0 : i32
    return %arg0, %c0_i32 : i32, i32
  }
}

</mosaic_0001>

<llo_original>
// kernel: tpu_custom_call.1
$region0: #{tpu_custom_call.1}
  #allocation0 [shape = 'u32[]', space=smem, size = 0x4, offset = 0x4, fixed_abs, tag = 'smem constant byte address 0x4 - core index']
  #allocation1 [shape = 'u32[144,128]{1,0:T(1,128)}', space=vmem, size = 0x12000, scoped, tag = 'internal scratch']
  %s0 = inlined_call_operand.vmem [shape: f32[4,8,32], index: 0, kind: input, shape index: {}]
  %s1 = inlined_call_operand.vmem [shape: f32[1,32], index: 1, kind: input, shape index: {}]
  %s2 = inlined_call_operand.vmem [shape: f32[32,16], index: 2, kind: input, shape index: {}]
  %s3 = inlined_call_operand.vmem [shape: f32[1,16], index: 3, kind: input, shape index: {}]
  %s4 = inlined_call_operand.vmem [shape: f32[16,128], index: 4, kind: input, shape index: {}]
  %s5 = inlined_call_operand.vmem [shape: f32[1,128], index: 5, kind: input, shape index: {}]
  %s6 = inlined_call_operand.hbm [shape: f32[4,128], index: 6, kind: output, shape index: {}]
  %s7 = sld [smem:[#allocation0]]
  $region34: #{tpu_custom_call.1} parent=0
    _
  %s9 = ssub.s32 1, %s7
  %s10 = scalar_select 0, %s9, %s7
  $region1: #{tpu_custom_call.1} parent=0
    #allocation2 [shape = 'u8[2048]{0}', space=vmem, size = 0x800, scoped, tag = 'output window, operand 0, single buffered']
    #allocation3 [shape = 's32[1]{0}', space=sflag, size = 0x4, scoped, tag = 'scoped memory for tpu_custom_call.1']
    %11 = vsyncpa [#allocation3], 0
    // Predicated region
    $region2: #{tpu_custom_call.1} parent=1 // pred_check
      _
    $region3: #{tpu_custom_call.1} parent=1 // pred_check_branch
      %13 = sbr.rel (0) target = $region5
    $region4: #{tpu_custom_call.1} parent=1 // pred_region
      _
    $region5: #{tpu_custom_call.1} parent=1 // pred_fallthru
      _
    // Predicated region
    $region6: #{tpu_custom_call.1} parent=1 // pred_check
      _
    $region7: #{tpu_custom_call.1} parent=1 // pred_check_branch
      %15 = sbr.rel (0) target = $region9
    $region8: #{tpu_custom_call.1} parent=1 // pred_region
      _
    $region9: #{tpu_custom_call.1} parent=1 // pred_fallthru
      _
    // Predicated region
    $region10: #{tpu_custom_call.1} parent=1 // pred_check
      _
    $region11: #{tpu_custom_call.1} parent=1 // pred_check_branch
      %17 = sbr.rel (0) target = $region13
    $region12: #{tpu_custom_call.1} parent=1 // pred_region
      _
    $region13: #{tpu_custom_call.1} parent=1 // pred_fallthru
      _
    // Predicated region
    $region14: #{tpu_custom_call.1} parent=1 // pred_check
      _
    $region15: #{tpu_custom_call.1} parent=1 // pred_check_branch
      %19 = sbr.rel (0) target = $region17
    $region16: #{tpu_custom_call.1} parent=1 // pred_region
      _
    $region17: #{tpu_custom_call.1} parent=1 // pred_fallthru
      _
    // Predicated region
    $region18: #{tpu_custom_call.1} parent=1 // pred_check
      _
    $region19: #{tpu_custom_call.1} parent=1 // pred_check_branch
      %21 = sbr.rel (0) target = $region21
    $region20: #{tpu_custom_call.1} parent=1 // pred_region
      _
    $region21: #{tpu_custom_call.1} parent=1 // pred_fallthru
      _
    // Predicated region
    $region22: #{tpu_custom_call.1} parent=1 // pred_check
      _
    $region23: #{tpu_custom_call.1} parent=1 // pred_check_branch
      %23 = sbr.rel (0) target = $region25
    $region24: #{tpu_custom_call.1} parent=1 // pred_region
      _
    $region25: #{tpu_custom_call.1} parent=1 // pred_fallthru
      _
    %v24 = vld [vmem:[%s0] sm:$0xff]
    %v25 = vld [vmem:[%s0 + $0x8] sm:$0xff]
    %v26 = vld [vmem:[%s0 + $0x10] sm:$0xff]
    %v27 = vld [vmem:[%s0 + $0x18] sm:$0xff]
    %v28 = vld [vmem:[%s1] sm:$0x1]
    %v30 = vlaneseq
    %v31 = vshrl.u32 %v30, 7
    %v32 = vsub.s32 0, %v31
    %v33 = vrot.slane %v28, %v32
    %v35 = vmul.f32 %v24, %v33
    %v36 = vmul.f32 %v25, %v33
    %v37 = vmul.f32 %v26, %v33
    %v38 = vmul.f32 %v27, %v33
    %vm39 = vcmask 261120
    %v40 = vsel %vm39, %v35, 0.0
    %41 = vadd.xlane.f32.xlu0 %v40
    %v42 = vpop.xlane.xlu0 %41
    %v43 = vsel %vm39, %v36, 0.0
    %44 = vadd.xlane.f32.xlu0 %v43
    %v45 = vpop.xlane.xlu0 %44
    %v46 = vsel %vm39, %v37, 0.0
    %47 = vadd.xlane.f32.xlu0 %v46
    %v48 = vpop.xlane.xlu0 %47
    %v49 = vsel %vm39, %v38, 0.0
    %50 = vadd.xlane.f32.xlu0 %v49
    %v51 = vpop.xlane.xlu0 %50
    %v56 = vlaneseq
    %v57 = vand.u32 %v56, 127
    %v58 = vlaneseq
    %v59 = vshrl.u32 %v58, 7
    %v60 = vsub.s32 %v57, %v59
    %v61 = vrot.slane %v42, %v60
    %v62 = vlaneseq
    %v63 = vshrl.u32 %v62, 7
    %v64 = vsub.s32 %v57, %v63
    %v65 = vrot.slane %v45, %v64
    %v66 = vlaneseq
    %v67 = vshrl.u32 %v66, 7
    %v68 = vsub.s32 %v57, %v67
    %v69 = vrot.slane %v48, %v68
    %v70 = vlaneseq
    %v71 = vshrl.u32 %v70, 7
    %v72 = vsub.s32 %v57, %v71
    %v73 = vrot.slane %v51, %v72
    %vm74 = vcmask 1041409
    %v75 = vsel %vm74, %v65, %v61
    %vm76 = vcmask 1042434
    %v77 = vsel %vm76, %v69, %v75
    %vm78 = vcmask 1043459
    %v79 = vsel %vm78, %v73, %v77
    %vm81 = vcmask 60416
    %v82 = vsel %vm81, %v79, -inf
    %83 = vmax.xlane.f32.xlu0 %v82
    %v84 = vpop.xlane.xlu0 %83
    %v86 = vlaneseq
    %v87 = vshrl.u32 %v86, 7
    %v88 = vsub.s32 0, %v87
    %v89 = vrot.slane %v84, %v88
    %v90 = vlaneseq
    %v91 = vshrl.u32 %v90, 7
    %v92 = vsub.s32 1, %v91
    %v93 = vrot.slane %v84, %v92
    %v94 = vlaneseq
    %v95 = vshrl.u32 %v94, 7
    %v96 = vsub.s32 2, %v95
    %v97 = vrot.slane %v84, %v96
    %v98 = vlaneseq
    %v99 = vshrl.u32 %v98, 7
    %v100 = vsub.s32 3, %v99
    %v101 = vrot.slane %v84, %v100
    %v106 = vsub.f32 %v42, %v89
    %v107 = vsub.f32 %v45, %v93
    %v108 = vsub.f32 %v48, %v97
    %v109 = vsub.f32 %v51, %v101
    %v110 = vmul.f32 %v106, 1.442695
    %v111 = vpow.pop %v110
    %v112 = vmul.f32 %v107, 1.442695
    %v113 = vpow.pop %v112
    %v114 = vmul.f32 %v108, 1.442695
    %v115 = vpow.pop %v114
    %v116 = vmul.f32 %v109, 1.442695
    %v117 = vpow.pop %v116
    %122 = vset.pattern.permute.xlu0 0
    %123 = vperm.xlu0 %122, %v111
    %v124 = vpop.permute.xlu0 %123
    %125 = vset.pattern.permute.xlu0 0
    %126 = vperm.xlu0 %125, %v113
    %v127 = vpop.permute.xlu0 %126
    %128 = vset.pattern.permute.xlu0 0
    %129 = vperm.xlu0 %128, %v115
    %v130 = vpop.permute.xlu0 %129
    %131 = vset.pattern.permute.xlu0 0
    %132 = vperm.xlu0 %131, %v117
    %v133 = vpop.permute.xlu0 %132
    %v134 = vlaneseq
    %v135 = vshrl.u32 %v134, 7
    %v136 = vsub.s32 %v57, %v135
    %v137 = vrot.slane %v124, %v136
    %v138 = vlaneseq
    %v139 = vshrl.u32 %v138, 7
    %v140 = vsub.s32 %v57, %v139
    %v141 = vrot.slane %v127, %v140
    %v142 = vlaneseq
    %v143 = vshrl.u32 %v142, 7
    %v144 = vsub.s32 %v57, %v143
    %v145 = vrot.slane %v130, %v144
    %v146 = vlaneseq
    %v147 = vshrl.u32 %v146, 7
    %v148 = vsub.s32 %v57, %v147
    %v149 = vrot.slane %v133, %v148
    %v150 = vsel %vm74, %v141, %v137
    %v151 = vsel %vm76, %v145, %v150
    %v152 = vsel %vm78, %v149, %v151
    %v154 = vsel %vm81, %v152, 0.0
    %155 = vadd.xlane.f32.xlu0 %v154
    %v156 = vpop.xlane.xlu0 %155
    %v158 = vlaneseq
    %v159 = vshrl.u32 %v158, 7
    %v160 = vsub.s32 0, %v159
    %v161 = vrot.slane %v156, %v160
    %v162 = vlaneseq
    %v163 = vshrl.u32 %v162, 7
    %v164 = vsub.s32 1, %v163
    %v165 = vrot.slane %v156, %v164
    %v166 = vlaneseq
    %v167 = vshrl.u32 %v166, 7
    %v168 = vsub.s32 2, %v167
    %v169 = vrot.slane %v156, %v168
    %v170 = vlaneseq
    %v171 = vshrl.u32 %v170, 7
    %v172 = vsub.s32 3, %v171
    %v173 = vrot.slane %v156, %v172
    %v178 = vrcp.pop %v161
    %v179 = vmul.f32 %v111, %v178
    %v180 = vrcp.pop %v165
    %v181 = vmul.f32 %v113, %v180
    %v182 = vrcp.pop %v169
    %v183 = vmul.f32 %v115, %v182
    %v184 = vrcp.pop %v173
    %v185 = vmul.f32 %v117, %v184
    %187 = vset.pattern.permute.xlu0 0
    %188 = vperm.xlu0 %187, %v179
    %v189 = vpop.permute.xlu0 %188
    %192 = vset.pattern.permute.xlu0 0
    %193 = vperm.xlu0 %192, %v181
    %v194 = vpop.permute.xlu0 %193
    %197 = vset.pattern.permute.xlu0 0
    %198 = vperm.xlu0 %197, %v183
    %v199 = vpop.permute.xlu0 %198
    %202 = vset.pattern.permute.xlu0 0
    %203 = vperm.xlu0 %202, %v185
    %v204 = vpop.permute.xlu0 %203
    %v206 = vmul.f32 %v189, %v24
    %v207 = vmul.f32 %v194, %v25
    %v208 = vmul.f32 %v199, %v26
    %v209 = vmul.f32 %v204, %v27
    %v210 = vsel %vm39, %v206, 0.0
    %v211 = vrot.slane %v210, 4
    %v212 = vadd.f32 %v210, %v211
    %v213 = vrot.slane %v212, 2
    %v214 = vadd.f32 %v212, %v213
    %v215 = vrot.slane %v214, 1
    %v216 = vadd.f32 %v214, %v215
    %v217 = vsel %vm39, %v207, 0.0
    %v218 = vrot.slane %v217, 4
    %v219 = vadd.f32 %v217, %v218
    %v220 = vrot.slane %v219, 2
    %v221 = vadd.f32 %v219, %v220
    %v222 = vrot.slane %v221, 1
    %v223 = vadd.f32 %v221, %v222
    %v224 = vsel %vm39, %v208, 0.0
    %v225 = vrot.slane %v224, 4
    %v226 = vadd.f32 %v224, %v225
    %v227 = vrot.slane %v226, 2
    %v228 = vadd.f32 %v226, %v227
    %v229 = vrot.slane %v228, 1
    %v230 = vadd.f32 %v228, %v229
    %v231 = vsel %vm39, %v209, 0.0
    %v232 = vrot.slane %v231, 4
    %v233 = vadd.f32 %v231, %v232
    %v234 = vrot.slane %v233, 2
    %v235 = vadd.f32 %v233, %v234
    %v236 = vrot.slane %v235, 1
    %v237 = vadd.f32 %v235, %v236
    %v238 = vld [vmem:[%s2] sm:$0xff]
    %v239 = vld [vmem:[%s2 + $0x8] sm:$0xff]
    %v240 = vld [vmem:[%s2 + $0x10] sm:$0xff]
    %v241 = vld [vmem:[%s2 + $0x18] sm:$0xff]
    %v242 = vld [vmem:[%s3] sm:$0x1]
    %v244 = vlaneseq
    %v245 = vshrl.u32 %v244, 7
    %v246 = vsub.s32 0, %v245
    %v247 = vrot.slane %v242, %v246
    %v253 = vsel %vm74, %v223, %v216
    %v254 = vsel %vm76, %v230, %v253
    %v255 = vsel %vm78, %v237, %v254
    %v256 = vsel %vm39, %v255, 0
    %258 = vmatprep.subr.mxu0 0.0
    %259 = vmatpush1.msra.mxu0 0.0
    %260 = vmatprep.subr.mxu0 0.0
    %261 = vmatpush1.msra.mxu0 0.0
    %262 = vmatprep.subr.mxu0 0.0
    %263 = vmatpush1.msra.mxu0 0.0
    %264 = vmatprep.subr.mxu0 0.0
    %265 = vmatpush1.msra.mxu0 0.0
    %266 = vmatprep.subr.mxu0 0.0
    %267 = vmatpush1.msra.mxu0 0.0
    %268 = vmatprep.subr.mxu0 0.0
    %269 = vmatpush1.msra.mxu0 0.0
    %270 = vmatprep.subr.mxu0 0.0
    %271 = vmatpush1.msra.mxu0 0.0
    %272 = vmatprep.subr.mxu0 0.0
    %273 = vmatpush1.msra.mxu0 0.0
    %274 = vmatprep.subr.mxu0 0.0
    %275 = vmatpush1.msra.mxu0 0.0
    %276 = vmatprep.subr.mxu0 0.0
    %277 = vmatpush1.msra.mxu0 0.0
    %278 = vmatprep.subr.mxu0 0.0
    %279 = vmatpush1.msra.mxu0 0.0
    %280 = vmatprep.subr.mxu0 0.0
    %281 = vmatpush1.msra.mxu0 0.0
    %282 = vmatprep.subr.mxu0 0.0
    %283 = vmatpush1.msra.mxu0 %v241
    %284 = vmatprep.subr.mxu0 0.0
    %285 = vmatpush1.msra.mxu0 %v240
    %286 = vmatprep.subr.mxu0 0.0
    %287 = vmatpush1.msra.mxu0 %v239
    %288 = vmatprep.subr.mxu0 0.0
    %289 = vmatpush1.msra.mxu0 %v238
    %290 = vmatprep.subr.mxu0 0.0
    %291 = vmatpush2.msra.mxu0 0.0
    %292 = vmatprep.subr.mxu0 0.0
    %293 = vmatpush2.msra.mxu0 0.0
    %294 = vmatprep.subr.mxu0 0.0
    %295 = vmatpush2.msra.mxu0 0.0
    %296 = vmatprep.subr.mxu0 0.0
    %297 = vmatpush2.msra.mxu0 0.0
    %298 = vmatprep.subr.mxu0 0.0
    %299 = vmatpush2.msra.mxu0 0.0
    %300 = vmatprep.subr.mxu0 0.0
    %301 = vmatpush2.msra.mxu0 0.0
    %302 = vmatprep.subr.mxu0 0.0
    %303 = vmatpush2.msra.mxu0 0.0
    %304 = vmatprep.subr.mxu0 0.0
    %305 = vmatpush2.msra.mxu0 0.0
    %306 = vmatprep.subr.mxu0 0.0
    %307 = vmatpush2.msra.mxu0 0.0
    %308 = vmatprep.subr.mxu0 0.0
    %309 = vmatpush2.msra.mxu0 0.0
    %310 = vmatprep.subr.mxu0 0.0
    %311 = vmatpush2.msra.mxu0 0.0
    %312 = vmatprep.subr.mxu0 0.0
    %313 = vmatpush2.msra.mxu0 0.0
    %314 = vmatprep.subr.mxu0 0.0
    %315 = vmatpush2.msra.mxu0 0.0
    %316 = vmatprep.subr.mxu0 0.0
    %317 = vmatpush2.msra.mxu0 0.0
    %318 = vmatprep.subr.mxu0 0.0
    %319 = vmatpush2.msra.mxu0 0.0
    %320 = vmatprep.subr.mxu0 0.0
    %321 = vmatpush2.msra.mxu0 0.0
    %322 = vmatprep.mubr.f32.mxu0 0.0
    %323 = vmatmul.mubr.f32.gmra.mxu0 %v256
    %v324 = vpop.f32.mrf.mxu0
    %v325 = vadd.f32 %v247, %v324
    %v326 = vpop.f32.mrf.mxu0
    %327 = vdwg.mxu0
    %v328 = vmul.f32 %v325, 0.5
    %v329 = vmul.f32 %v325, 0.70710677
    %v330 = verf.f32.pop %v329
    %v331 = vadd.f32 %v330, 1.0
    %v332 = vmul.f32 %v328, %v331
    %v333 = vld [vmem:[%s4] sm:$0xff]
    %v334 = vld [vmem:[%s4 + $0x8] sm:$0xff]
    %v335 = vld [vmem:[%s5] sm:$0x1]
    %v337 = vlaneseq
    %v338 = vshrl.u32 %v337, 7
    %v339 = vsub.s32 0, %v338
    %v340 = vrot.slane %v335, %v339
    %vm342 = vcmask 130048
    %v344 = vsel %vm342, %v332, 0
    %346 = vmatprep.subr.mxu0 0.0
    %347 = vmatpush1.msra.mxu0 0.0
    %348 = vmatprep.subr.mxu0 0.0
    %349 = vmatpush1.msra.mxu0 0.0
    %350 = vmatprep.subr.mxu0 0.0
    %351 = vmatpush1.msra.mxu0 0.0
    %352 = vmatprep.subr.mxu0 0.0
    %353 = vmatpush1.msra.mxu0 0.0
    %354 = vmatprep.subr.mxu0 0.0
    %355 = vmatpush1.msra.mxu0 0.0
    %356 = vmatprep.subr.mxu0 0.0
    %357 = vmatpush1.msra.mxu0 0.0
    %358 = vmatprep.subr.mxu0 0.0
    %359 = vmatpush1.msra.mxu0 0.0
    %360 = vmatprep.subr.mxu0 0.0
    %361 = vmatpush1.msra.mxu0 0.0
    %362 = vmatprep.subr.mxu0 0.0
    %363 = vmatpush1.msra.mxu0 0.0
    %364 = vmatprep.subr.mxu0 0.0
    %365 = vmatpush1.msra.mxu0 0.0
    %366 = vmatprep.subr.mxu0 0.0
    %367 = vmatpush1.msra.mxu0 0.0
    %368 = vmatprep.subr.mxu0 0.0
    %369 = vmatpush1.msra.mxu0 0.0
    %370 = vmatprep.subr.mxu0 0.0
    %371 = vmatpush1.msra.mxu0 0.0
    %372 = vmatprep.subr.mxu0 0.0
    %373 = vmatpush1.msra.mxu0 0.0
    %374 = vmatprep.subr.mxu0 0.0
    %375 = vmatpush1.msra.mxu0 %v334
    %376 = vmatprep.subr.mxu0 0.0
    %377 = vmatpush1.msra.mxu0 %v333
    %378 = vmatprep.subr.mxu0 0.0
    %379 = vmatpush2.msra.mxu0 0.0
    %380 = vmatprep.subr.mxu0 0.0
    %381 = vmatpush2.msra.mxu0 0.0
    %382 = vmatprep.subr.mxu0 0.0
    %383 = vmatpush2.msra.mxu0 0.0
    %384 = vmatprep.subr.mxu0 0.0
    %385 = vmatpush2.msra.mxu0 0.0
    %386 = vmatprep.subr.mxu0 0.0
    %387 = vmatpush2.msra.mxu0 0.0
    %388 = vmatprep.subr.mxu0 0.0
    %389 = vmatpush2.msra.mxu0 0.0
    %390 = vmatprep.subr.mxu0 0.0
    %391 = vmatpush2.msra.mxu0 0.0
    %392 = vmatprep.subr.mxu0 0.0
    %393 = vmatpush2.msra.mxu0 0.0
    %394 = vmatprep.subr.mxu0 0.0
    %395 = vmatpush2.msra.mxu0 0.0
    %396 = vmatprep.subr.mxu0 0.0
    %397 = vmatpush2.msra.mxu0 0.0
    %398 = vmatprep.subr.mxu0 0.0
    %399 = vmatpush2.msra.mxu0 0.0
    %400 = vmatprep.subr.mxu0 0.0
    %401 = vmatpush2.msra.mxu0 0.0
    %402 = vmatprep.subr.mxu0 0.0
    %403 = vmatpush2.msra.mxu0 0.0
    %404 = vmatprep.subr.mxu0 0.0
    %405 = vmatpush2.msra.mxu0 0.0
    %406 = vmatprep.subr.mxu0 0.0
    %407 = vmatpush2.msra.mxu0 0.0
    %408 = vmatprep.subr.mxu0 0.0
    %409 = vmatpush2.msra.mxu0 0.0
    %410 = vmatprep.mubr.f32.mxu0 0.0
    %411 = vmatmul.mubr.f32.gmra.mxu0 %v344
    %v412 = vpop.f32.mrf.mxu0
    %v413 = vadd.f32 %v340, %v412
    %v414 = vpop.f32.mrf.mxu0
    %415 = vdwg.mxu0
    %v416 = vxor.u32 %v413, 2147483648
    %v417 = vmul.f32 %v416, 1.442695
    %v418 = vpow.pop %v417
    %v419 = vadd.f32 %v418, 1.0
    %v420 = vrcp.pop %v419
    %v421 = vmul.f32 1.0, %v420
    %422 = vst [vmem:[#allocation2] sm:$0xf] %v421
    // Predicated region
    $region26: #{tpu_custom_call.1} parent=1 // pred_check
      _
    $region27: #{tpu_custom_call.1} parent=1 // pred_check_branch
      %424 = sbr.rel (0) target = $region29
    $region28: #{tpu_custom_call.1} parent=1 // pred_region
      %s426 = ssub.s32 64, 64
      %427 = vsyncadd [#allocation3], %s426
      %s429 = sshll.u32 [#allocation2], 4
      %s430 = int_to_ptr.vmem [resolvable:$true] %s429
      %432 = dma.vmem_to_hbm [thread:$0]  %s430, 64, %s6, [#allocation3]
    $region29: #{tpu_custom_call.1} parent=1 // pred_fallthru
      _
    // Predicated region
    $region30: #{tpu_custom_call.1} parent=1 // pred_check
      _
    $region31: #{tpu_custom_call.1} parent=1 // pred_check_branch
      %434 = sbr.rel (0) target = $region33
    $region32: #{tpu_custom_call.1} parent=1 // pred_region
      %435 = dma.done [#allocation3], 64
    $region33: #{tpu_custom_call.1} parent=1 // pred_fallthru
      _
    %436 = vsyncpa [#allocation3], 1

</llo_original>
